<compile_context>
chip_gen: v5e
topology: v5e:2x2
jax: 0.10.0
libtpu: 0.0.40
codegen_flags: <defaults>
</compile_context>

<pallas_src>
import functools

import jax
import jax.numpy as jnp
from jax.experimental import pallas as pl
from jax.experimental.pallas import tpu as pltpu

TILE = 128  # every layer width padded to one 128-lane MXU tile inside the slab


def _round_up(n, m):
    return ((n + m - 1) // m) * m


def _mlp_kernel(x_ref, w_ref, b_ref, o_ref, *, k1, dim_out):
    """Fused 4-layer MLP, activations VMEM/vreg-resident, f32 accumulation."""
    cdt = w_ref.dtype  # compute dtype (bf16 or f32)
    x = x_ref[...].astype(cdt)

    # Layer 1: real contraction K = k1 (rows k1: of slot 0 are zero anyway).
    h = jnp.dot(x, w_ref[:k1, 0:TILE], preferred_element_type=jnp.float32)
    h = jnp.maximum(h + b_ref[:, 0:TILE], 0.0)

    # Layers 2-3: full 128-wide K is exact (padded rows/cols are zero).
    h = jnp.dot(h.astype(cdt), w_ref[:, TILE:2 * TILE],
                preferred_element_type=jnp.float32)
    h = jnp.maximum(h + b_ref[:, TILE:2 * TILE], 0.0)

    h = jnp.dot(h.astype(cdt), w_ref[:, 2 * TILE:3 * TILE],
                preferred_element_type=jnp.float32)
    h = jnp.maximum(h + b_ref[:, 2 * TILE:3 * TILE], 0.0)

    # Output layer: compute 128 wide, store only the real dim_out lanes.
    h = jnp.dot(h.astype(cdt), w_ref[:, 3 * TILE:4 * TILE],
                preferred_element_type=jnp.float32)
    h = h + b_ref[:, 3 * TILE:4 * TILE]
    o_ref[...] = h[:, :dim_out].astype(o_ref.dtype)


def _pack_slabs(params, cdt):
    """Pad each layer's (in,out) weight / (1,out) bias to a 128-wide tile and
    concatenate along lanes -> one (128, 512) weight slab, one (1, 512) bias
    slab. Tiny (~11k params), done once per trace."""
    ws, bs = [], []
    for idx in range(1, 5):
        w = params[f"w{idx}"]
        b = params[f"b{idx}"]
        ws.append(jnp.pad(w, ((0, TILE - w.shape[0]), (0, TILE - w.shape[1]))))
        bs.append(jnp.pad(b, ((0, 0), (0, TILE - b.shape[1]))))
    w_slab = jnp.concatenate(ws, axis=1).astype(cdt)          # (128, 512)
    b_slab = jnp.concatenate(bs, axis=1).astype(jnp.float32)  # (1, 512), f32
    return w_slab, b_slab


@functools.partial(jax.jit, static_argnames=("block_b", "compute_dtype"))
def net_alpha_forward(x, params, *, block_b=1024, compute_dtype=jnp.bfloat16):
    """x: (B, dim_in) float32. params: w1..w4 stored (in,out), b1..b4 (1,out)."""
    B, dim_in = x.shape
    dim_out = params["w4"].shape[1]
    cdt = jnp.dtype(compute_dtype)
    k1 = _round_up(dim_in, 8)  # x lane dim rounded to sublane multiple (16->16)

    # Batch tile: multiple of 8, no larger than the batch; prefer >= 2 grid
    # steps when the batch allows it so both v7x TensorCores get work.
    B8 = _round_up(B, 8)
    bb = max(8, (min(int(block_b), B8) // 8) * 8)
    if B8 // bb < 2 and B8 >= 16:
        bb = _round_up((B8 + 1) // 2, 8)
    B_pad = _round_up(B, bb)
    grid = (B_pad // bb,)

    # Only the tiny batch-row / lane-to-multiple-of-8 pads remain (no 16->128
    # lane padding of x, no 128-wide output).
    if B_pad == B and k1 == dim_in:
        x_p = x
    else:
        x_p = jnp.pad(x, ((0, B_pad - B), (0, k1 - dim_in)))

    w_slab, b_slab = _pack_slabs(params, cdt)
    kernel = functools.partial(_mlp_kernel, k1=k1, dim_out=dim_out)

    # Advisory cost estimate at (near-)unpadded problem sizes.
    flops = 2 * B_pad * (k1 * 32 + 32 * 64 + 64 * 128 + 128 * dim_out)
    bytes_accessed = (x_p.size * x_p.dtype.itemsize
                      + B_pad * dim_out * x.dtype.itemsize
                      + w_slab.size * w_slab.dtype.itemsize
                      + b_slab.size * 4)
    cost = pl.CostEstimate(flops=int(flops), transcendentals=0,
                           bytes_accessed=int(bytes_accessed))

    # VMEM: double-buffered x/out tiles + resident slabs + live activations.
    vmem_bytes = (2 * bb * (k1 + dim_out) * x.dtype.itemsize
                  + 2 * (w_slab.size * cdt.itemsize + b_slab.size * 4)
                  + 4 * bb * TILE * 4
                  + (2 << 20))
    vmem_limit = int(min(max(vmem_bytes, 8 << 20), 32 << 20))

    out = pl.pallas_call(
        kernel,
        out_shape=jax.ShapeDtypeStruct((B_pad, dim_out), x.dtype),
        grid_spec=pltpu.PrefetchScalarGridSpec(
            num_scalar_prefetch=0,
            grid=grid,
            in_specs=[
                pl.BlockSpec((bb, k1), lambda i: (i, 0)),      # x rows tile
                pl.BlockSpec(w_slab.shape, lambda i: (0, 0)),  # resident slab
                pl.BlockSpec(b_slab.shape, lambda i: (0, 0)),  # resident slab
            ],
            out_specs=pl.BlockSpec((bb, dim_out), lambda i: (i, 0)),
        ),
        compiler_params=pltpu.CompilerParams(
            dimension_semantics=("parallel",),
            vmem_limit_bytes=vmem_limit),
        cost_estimate=cost,
    )(x_p, w_slab, b_slab)

    return out if B_pad == B else out[:B]


def init_params(key, dim_in, dim_out):
    """Deterministic init matching nn.Linear shapes (stored transposed (in,out))."""
    sizes = [(dim_in, 32), (32, 64), (64, 128), (128, dim_out)]
    params = {}
    for idx, (fan_in, fan_out) in enumerate(sizes, start=1):
        key, kw, kb = jax.random.split(key, 3)
        bound = 1.0 / jnp.sqrt(fan_in)
        params[f"w{idx}"] = jax.random.uniform(
            kw, (fan_in, fan_out), jnp.float32, -bound, bound)
        params[f"b{idx}"] = jax.random.uniform(
            kb, (1, fan_out), jnp.float32, -bound, bound)
    return params


def reference_forward(x, params):
    h = x
    for idx in range(1, 4):
        h = jnp.maximum(h @ params[f"w{idx}"] + params[f"b{idx}"], 0.0)
    return h @ params["w4"] + params["b4"]


if __name__ == "__main__":
    dim_in, dim_out = 16, 10

    key = jax.random.PRNGKey(0)
    params = init_params(key, dim_in, dim_out)

    # 1) Small strict f32 check (single tile).
    key, kx = jax.random.split(key)
    x_small = jax.random.normal(kx, (8, dim_in), jnp.float32)
    out = jax.block_until_ready(
        net_alpha_forward(x_small, params, compute_dtype=jnp.float32))
    ref = reference_forward(x_small, params)
    assert out.shape == (8, dim_out)
    assert jnp.allclose(out, ref, atol=1e-5, rtol=1e-5)

    # 2) Multi-tile default (bf16 operands, f32 accumulation): B=256 splits
    #    into a 2-step "parallel" grid (dual TensorCore on v7x).
    key, kx2 = jax.random.split(key)
    x_big = jax.random.normal(kx2, (256, dim_in), jnp.float32)
    out_bf = jax.block_until_ready(net_alpha_forward(x_big, params))
    ref_bf = reference_forward(x_big, params)
    assert out_bf.shape == (256, dim_out)
    assert jnp.allclose(out_bf, ref_bf, atol=5e-2, rtol=5e-2)

    print("KERNEL_OK")
</pallas_src>

<mosaic_0001>
module attributes {stable_mosaic.version = 11 : i64} {
  func.func @_mlp_kernel(%arg0: i32, %arg1: memref<8x16xf32, #tpu.memory_space<vmem>>, %arg2: memref<128x512xf32, #tpu.memory_space<vmem>>, %arg3: memref<1x512xf32, #tpu.memory_space<vmem>>, %arg4: memref<8x10xf32, #tpu.memory_space<vmem>>) attributes {dimension_semantics = [#tpu.dimension_semantics<parallel>], iteration_bounds = array<i64: 1>, scalar_prefetch = 0 : i64, scratch_operands = 0 : i64, tpu.core_type = #tpu.core_type<tc>, window_params = [{transform_indices = @transform_0, window_bounds = array<i64: 8, 16>}, {pipeline_mode = #tpu.pipeline_mode<synchronous>, transform_indices = @transform_1, window_bounds = array<i64: 128, 512>}, {pipeline_mode = #tpu.pipeline_mode<synchronous>, transform_indices = @transform_2, window_bounds = array<i64: 1, 512>}, {transform_indices = @transform_3, window_bounds = array<i64: 8, 10>}]} {
    %c0 = arith.constant 0 : index
    %c0_0 = arith.constant 0 : index
    %0 = vector.load %arg1[%c0, %c0_0] : memref<8x16xf32, #tpu.memory_space<vmem>>, vector<8x16xf32>
    %c0_1 = arith.constant 0 : index
    %c0_2 = arith.constant 0 : index
    %1 = vector.load %arg2[%c0_1, %c0_2] : memref<128x512xf32, #tpu.memory_space<vmem>>, vector<16x128xf32>
    %cst = arith.constant dense<0.000000e+00> : vector<8x128xf32>
    %2 = tpu.matmul %0, %1, %cst {dimension_numbers = #tpu.dot_dimension_numbers<[1], [0], [0], [1], [0, 0, 1, 1], [], []>} : vector<8x16xf32>, vector<16x128xf32>, vector<8x128xf32> -> vector<8x128xf32>
    %c0_3 = arith.constant 0 : index
    %c0_4 = arith.constant 0 : index
    %3 = vector.load %arg3[%c0_3, %c0_4] : memref<1x512xf32, #tpu.memory_space<vmem>>, vector<1x128xf32>
    %4 = vector.broadcast %3 : vector<1x128xf32> to vector<8x128xf32>
    %5 = arith.addf %2, %4 : vector<8x128xf32>
    %cst_5 = arith.constant 0.000000e+00 : f32
    %6 = vector.broadcast %cst_5 : f32 to vector<8x128xf32>
    %7 = arith.maximumf %5, %6 : vector<8x128xf32>
    %c0_6 = arith.constant 0 : index
    %c128 = arith.constant 128 : index
    %8 = vector.load %arg2[%c0_6, %c128] : memref<128x512xf32, #tpu.memory_space<vmem>>, vector<128x128xf32>
    %cst_7 = arith.constant dense<0.000000e+00> : vector<8x128xf32>
    %9 = tpu.matmul %7, %8, %cst_7 {dimension_numbers = #tpu.dot_dimension_numbers<[1], [0], [0], [1], [0, 0, 1, 1], [], []>} : vector<8x128xf32>, vector<128x128xf32>, vector<8x128xf32> -> vector<8x128xf32>
    %c0_8 = arith.constant 0 : index
    %c128_9 = arith.constant 128 : index
    %10 = vector.load %arg3[%c0_8, %c128_9] : memref<1x512xf32, #tpu.memory_space<vmem>>, vector<1x128xf32>
    %11 = vector.broadcast %10 : vector<1x128xf32> to vector<8x128xf32>
    %12 = arith.addf %9, %11 : vector<8x128xf32>
    %cst_10 = arith.constant 0.000000e+00 : f32
    %13 = vector.broadcast %cst_10 : f32 to vector<8x128xf32>
    %14 = arith.maximumf %12, %13 : vector<8x128xf32>
    %c0_11 = arith.constant 0 : index
    %c256 = arith.constant 256 : index
    %15 = vector.load %arg2[%c0_11, %c256] : memref<128x512xf32, #tpu.memory_space<vmem>>, vector<128x128xf32>
    %cst_12 = arith.constant dense<0.000000e+00> : vector<8x128xf32>
    %16 = tpu.matmul %14, %15, %cst_12 {dimension_numbers = #tpu.dot_dimension_numbers<[1], [0], [0], [1], [0, 0, 1, 1], [], []>} : vector<8x128xf32>, vector<128x128xf32>, vector<8x128xf32> -> vector<8x128xf32>
    %c0_13 = arith.constant 0 : index
    %c256_14 = arith.constant 256 : index
    %17 = vector.load %arg3[%c0_13, %c256_14] : memref<1x512xf32, #tpu.memory_space<vmem>>, vector<1x128xf32>
    %18 = vector.broadcast %17 : vector<1x128xf32> to vector<8x128xf32>
    %19 = arith.addf %16, %18 : vector<8x128xf32>
    %cst_15 = arith.constant 0.000000e+00 : f32
    %20 = vector.broadcast %cst_15 : f32 to vector<8x128xf32>
    %21 = arith.maximumf %19, %20 : vector<8x128xf32>
    %c0_16 = arith.constant 0 : index
    %c384 = arith.constant 384 : index
    %22 = vector.load %arg2[%c0_16, %c384] : memref<128x512xf32, #tpu.memory_space<vmem>>, vector<128x128xf32>
    %cst_17 = arith.constant dense<0.000000e+00> : vector<8x128xf32>
    %23 = tpu.matmul %21, %22, %cst_17 {dimension_numbers = #tpu.dot_dimension_numbers<[1], [0], [0], [1], [0, 0, 1, 1], [], []>} : vector<8x128xf32>, vector<128x128xf32>, vector<8x128xf32> -> vector<8x128xf32>
    %c0_18 = arith.constant 0 : index
    %c384_19 = arith.constant 384 : index
    %24 = vector.load %arg3[%c0_18, %c384_19] : memref<1x512xf32, #tpu.memory_space<vmem>>, vector<1x128xf32>
    %25 = vector.broadcast %24 : vector<1x128xf32> to vector<8x128xf32>
    %26 = arith.addf %23, %25 : vector<8x128xf32>
    %27 = vector.extract_strided_slice %26 {offsets = [0, 0], sizes = [8, 10], strides = [1, 1]} : vector<8x128xf32> to vector<8x10xf32>
    %c0_20 = arith.constant 0 : index
    %c0_21 = arith.constant 0 : index
    %28 = vector.load %arg4[%c0_20, %c0_21] : memref<8x10xf32, #tpu.memory_space<vmem>>, vector<8x10xf32>
    tpu.vector_store %arg4[%c0_20, %c0_21], %27 {strides = array<i32>} : memref<8x10xf32, #tpu.memory_space<vmem>>, vector<8x10xf32>,
    return
  }
  func.func @transform_0(%arg0: i32) -> (i32, i32) {
    %c0_i32 = arith.constant 0 : i32
    %c0_i32_0 = arith.constant 0 : i32
    return %arg0, %c0_i32 : i32, i32
  }
  func.func @transform_1(%arg0: i32) -> (i32, i32) {
    %c0_i32 = arith.constant 0 : i32
    %c0_i32_0 = arith.constant 0 : i32
    %c0_i32_1 = arith.constant 0 : i32
    return %c0_i32, %c0_i32_0 : i32, i32
  }
  func.func @transform_2(%arg0: i32) -> (i32, i32) {
    %c0_i32 = arith.constant 0 : i32
    %c0_i32_0 = arith.constant 0 : i32
    %c0_i32_1 = arith.constant 0 : i32
    return %c0_i32, %c0_i32_0 : i32, i32
  }
  func.func @transform_3(%arg0: i32) -> (i32, i32) {
    %c0_i32 = arith.constant 0 : i32
    %c0_i32_0 = arith.constant 0 : i32
    return %arg0, %c0_i32 : i32, i32
  }
}

</mosaic_0001>

<llo_original>
// kernel: net_alpha_forward.1
$region0: #{net_alpha_forward.1}
  #allocation0 [shape = 'u32[]', space=smem, size = 0x4, offset = 0x4, fixed_abs, tag = 'smem constant byte address 0x4 - core index']
  #allocation1 [shape = 'u32[72,128]{1,0:T(1,128)}', space=vmem, size = 0x9000, scoped, tag = 'internal scratch']
  %s0 = inlined_call_operand.vmem [shape: f32[8,16], index: 0, kind: input, shape index: {}]
  %s1 = inlined_call_operand.vmem [shape: f32[128,512], index: 1, kind: input, shape index: {}]
  %s2 = inlined_call_operand.vmem [shape: f32[1,512], index: 2, kind: input, shape index: {}]
  %s3 = inlined_call_operand.hbm [shape: f32[8,10], index: 3, kind: output, shape index: {}]
  %s4 = sld [smem:[#allocation0]]
  $region22: #{net_alpha_forward.1} parent=0
    _
  %s6 = ssub.s32 1, %s4
  %s7 = scalar_select 0, %s6, %s4
  $region1: #{net_alpha_forward.1} parent=0
    #allocation2 [shape = 'u8[4096]{0}', space=vmem, size = 0x1000, scoped, tag = 'output window, operand 0, single buffered']
    #allocation3 [shape = 's32[1]{0}', space=sflag, size = 0x4, scoped, tag = 'scoped memory for net_alpha_forward.1']
    %8 = vsyncpa [#allocation3], 0
    // Predicated region
    $region2: #{net_alpha_forward.1} parent=1 // pred_check
      _
    $region3: #{net_alpha_forward.1} parent=1 // pred_check_branch
      %10 = sbr.rel (0) target = $region5
    $region4: #{net_alpha_forward.1} parent=1 // pred_region
      _
    $region5: #{net_alpha_forward.1} parent=1 // pred_fallthru
      _
    // Predicated region
    $region6: #{net_alpha_forward.1} parent=1 // pred_check
      _
    $region7: #{net_alpha_forward.1} parent=1 // pred_check_branch
      %12 = sbr.rel (0) target = $region9
    $region8: #{net_alpha_forward.1} parent=1 // pred_region
      _
    $region9: #{net_alpha_forward.1} parent=1 // pred_fallthru
      _
    // Predicated region
    $region10: #{net_alpha_forward.1} parent=1 // pred_check
      _
    $region11: #{net_alpha_forward.1} parent=1 // pred_check_branch
      %14 = sbr.rel (0) target = $region13
    $region12: #{net_alpha_forward.1} parent=1 // pred_region
      _
    $region13: #{net_alpha_forward.1} parent=1 // pred_fallthru
      _
    %v15 = vld [vmem:[%s0] sm:$0xff]
    %v16 = vld [vmem:[%s1] sm:$0xff]
    %v17 = vld [vmem:[%s1 + $0x20] sm:$0xff]
    %v18 = vld [vmem:[%s2] sm:$0x1]
    %v20 = vperm.slane %v18, 0
    %vm22 = vcmask 130048
    %v24 = vsel %vm22, %v15, 0
    %26 = vmatpush.msra.mxu0 0.0
    %27 = vmatpush.msra.mxu0 0.0
    %28 = vmatpush.msra.mxu0 0.0
    %29 = vmatpush.msra.mxu0 0.0
    %30 = vmatpush.msra.mxu0 0.0
    %31 = vmatpush.msra.mxu0 0.0
    %32 = vmatpush.msra.mxu0 0.0
    %33 = vmatpush.msra.mxu0 0.0
    %34 = vmatpush.msra.mxu0 0.0
    %35 = vmatpush.msra.mxu0 0.0
    %36 = vmatpush.msra.mxu0 0.0
    %37 = vmatpush.msra.mxu0 0.0
    %38 = vmatpush.msra.mxu0 0.0
    %39 = vmatpush.msra.mxu0 0.0
    %40 = vmatpush.msra.mxu0 %v17
    %41 = vmatpush.msra.mxu0 %v16
    %42 = vmatmul.f32.gmra.mxu0 %v24
    %v43 = vpop.f32.mrf.mxu0
    %v44 = vadd.f32 %v20, %v43
    %45 = vdwg.mxu0
    %v46 = vmax.f32 %v44, 0.0
    %v47 = vld [vmem:[%s1 + $0x8] sm:$0xff]
    %v48 = vld [vmem:[%s1 + $0x28] sm:$0xff]
    %v49 = vld [vmem:[%s1 + $0x48] sm:$0xff]
    %v50 = vld [vmem:[%s1 + $0x68] sm:$0xff]
    %v51 = vld [vmem:[%s1 + $0x88] sm:$0xff]
    %v52 = vld [vmem:[%s1 + $0xa8] sm:$0xff]
    %v53 = vld [vmem:[%s1 + $0xc8] sm:$0xff]
    %v54 = vld [vmem:[%s1 + $0xe8] sm:$0xff]
    %v55 = vld [vmem:[%s1 + $0x108] sm:$0xff]
    %v56 = vld [vmem:[%s1 + $0x128] sm:$0xff]
    %v57 = vld [vmem:[%s1 + $0x148] sm:$0xff]
    %v58 = vld [vmem:[%s1 + $0x168] sm:$0xff]
    %v59 = vld [vmem:[%s1 + $0x188] sm:$0xff]
    %v60 = vld [vmem:[%s1 + $0x1a8] sm:$0xff]
    %v61 = vld [vmem:[%s1 + $0x1c8] sm:$0xff]
    %v62 = vld [vmem:[%s1 + $0x1e8] sm:$0xff]
    %v63 = vld [vmem:[%s2 + $0x1] sm:$0x1]
    %v65 = vperm.slane %v63, 0
    %67 = vmatpush.msra.mxu0 %v62
    %68 = vmatpush.msra.mxu0 %v61
    %69 = vmatpush.msra.mxu0 %v60
    %70 = vmatpush.msra.mxu0 %v59
    %71 = vmatpush.msra.mxu0 %v58
    %72 = vmatpush.msra.mxu0 %v57
    %73 = vmatpush.msra.mxu0 %v56
    %74 = vmatpush.msra.mxu0 %v55
    %75 = vmatpush.msra.mxu0 %v54
    %76 = vmatpush.msra.mxu0 %v53
    %77 = vmatpush.msra.mxu0 %v52
    %78 = vmatpush.msra.mxu0 %v51
    %79 = vmatpush.msra.mxu0 %v50
    %80 = vmatpush.msra.mxu0 %v49
    %81 = vmatpush.msra.mxu0 %v48
    %82 = vmatpush.msra.mxu0 %v47
    %83 = vmatmul.f32.gmra.mxu0 %v46
    %v84 = vpop.f32.mrf.mxu0
    %v85 = vadd.f32 %v65, %v84
    %86 = vdwg.mxu0
    %v87 = vmax.f32 %v85, 0.0
    %v88 = vld [vmem:[%s1 + $0x10] sm:$0xff]
    %v89 = vld [vmem:[%s1 + $0x30] sm:$0xff]
    %v90 = vld [vmem:[%s1 + $0x50] sm:$0xff]
    %v91 = vld [vmem:[%s1 + $0x70] sm:$0xff]
    %v92 = vld [vmem:[%s1 + $0x90] sm:$0xff]
    %v93 = vld [vmem:[%s1 + $0xb0] sm:$0xff]
    %v94 = vld [vmem:[%s1 + $0xd0] sm:$0xff]
    %v95 = vld [vmem:[%s1 + $0xf0] sm:$0xff]
    %v96 = vld [vmem:[%s1 + $0x110] sm:$0xff]
    %v97 = vld [vmem:[%s1 + $0x130] sm:$0xff]
    %v98 = vld [vmem:[%s1 + $0x150] sm:$0xff]
    %v99 = vld [vmem:[%s1 + $0x170] sm:$0xff]
    %v100 = vld [vmem:[%s1 + $0x190] sm:$0xff]
    %v101 = vld [vmem:[%s1 + $0x1b0] sm:$0xff]
    %v102 = vld [vmem:[%s1 + $0x1d0] sm:$0xff]
    %v103 = vld [vmem:[%s1 + $0x1f0] sm:$0xff]
    %v104 = vld [vmem:[%s2 + $0x2] sm:$0x1]
    %v106 = vperm.slane %v104, 0
    %108 = vmatpush.msra.mxu0 %v103
    %109 = vmatpush.msra.mxu0 %v102
    %110 = vmatpush.msra.mxu0 %v101
    %111 = vmatpush.msra.mxu0 %v100
    %112 = vmatpush.msra.mxu0 %v99
    %113 = vmatpush.msra.mxu0 %v98
    %114 = vmatpush.msra.mxu0 %v97
    %115 = vmatpush.msra.mxu0 %v96
    %116 = vmatpush.msra.mxu0 %v95
    %117 = vmatpush.msra.mxu0 %v94
    %118 = vmatpush.msra.mxu0 %v93
    %119 = vmatpush.msra.mxu0 %v92
    %120 = vmatpush.msra.mxu0 %v91
    %121 = vmatpush.msra.mxu0 %v90
    %122 = vmatpush.msra.mxu0 %v89
    %123 = vmatpush.msra.mxu0 %v88
    %124 = vmatmul.f32.gmra.mxu0 %v87
    %v125 = vpop.f32.mrf.mxu0
    %v126 = vadd.f32 %v106, %v125
    %127 = vdwg.mxu0
    %v128 = vmax.f32 %v126, 0.0
    %v129 = vld [vmem:[%s1 + $0x18] sm:$0xff]
    %v130 = vld [vmem:[%s1 + $0x38] sm:$0xff]
    %v131 = vld [vmem:[%s1 + $0x58] sm:$0xff]
    %v132 = vld [vmem:[%s1 + $0x78] sm:$0xff]
    %v133 = vld [vmem:[%s1 + $0x98] sm:$0xff]
    %v134 = vld [vmem:[%s1 + $0xb8] sm:$0xff]
    %v135 = vld [vmem:[%s1 + $0xd8] sm:$0xff]
    %v136 = vld [vmem:[%s1 + $0xf8] sm:$0xff]
    %v137 = vld [vmem:[%s1 + $0x118] sm:$0xff]
    %v138 = vld [vmem:[%s1 + $0x138] sm:$0xff]
    %v139 = vld [vmem:[%s1 + $0x158] sm:$0xff]
    %v140 = vld [vmem:[%s1 + $0x178] sm:$0xff]
    %v141 = vld [vmem:[%s1 + $0x198] sm:$0xff]
    %v142 = vld [vmem:[%s1 + $0x1b8] sm:$0xff]
    %v143 = vld [vmem:[%s1 + $0x1d8] sm:$0xff]
    %v144 = vld [vmem:[%s1 + $0x1f8] sm:$0xff]
    %v145 = vld [vmem:[%s2 + $0x3] sm:$0x1]
    %v147 = vperm.slane %v145, 0
    %149 = vmatpush.msra.mxu0 %v144
    %150 = vmatpush.msra.mxu0 %v143
    %151 = vmatpush.msra.mxu0 %v142
    %152 = vmatpush.msra.mxu0 %v141
    %153 = vmatpush.msra.mxu0 %v140
    %154 = vmatpush.msra.mxu0 %v139
    %155 = vmatpush.msra.mxu0 %v138
    %156 = vmatpush.msra.mxu0 %v137
    %157 = vmatpush.msra.mxu0 %v136
    %158 = vmatpush.msra.mxu0 %v135
    %159 = vmatpush.msra.mxu0 %v134
    %160 = vmatpush.msra.mxu0 %v133
    %161 = vmatpush.msra.mxu0 %v132
    %162 = vmatpush.msra.mxu0 %v131
    %163 = vmatpush.msra.mxu0 %v130
    %164 = vmatpush.msra.mxu0 %v129
    %165 = vmatmul.f32.gmra.mxu0 %v128
    %v166 = vpop.f32.mrf.mxu0
    %v167 = vadd.f32 %v147, %v166
    %168 = vdwg.mxu0
    %vm169 = vcmask 80896
    %170 = vst.msk [vmem:[#allocation2] sm:$0xff] %vm169, %v167
    // Predicated region
    $region14: #{net_alpha_forward.1} parent=1 // pred_check
      _
    $region15: #{net_alpha_forward.1} parent=1 // pred_check_branch
      %172 = sbr.rel (0) target = $region17
    $region16: #{net_alpha_forward.1} parent=1 // pred_region
      %174 = vsyncadd [#allocation3], 0
      %s176 = sshll.u32 [#allocation2], 4
      %s177 = int_to_ptr.vmem [resolvable:$true] %s176
      %s178 = sshll.u32 %s3, 4
      %s179 = int_to_ptr.hbm [resolvable:$true] %s178
      %181 = dma.vmem_to_hbm [thread:$0]  %s177, 128, %s179, [#allocation3]
    $region17: #{net_alpha_forward.1} parent=1 // pred_fallthru
      _
    // Predicated region
    $region18: #{net_alpha_forward.1} parent=1 // pred_check
      _
    $region19: #{net_alpha_forward.1} parent=1 // pred_check_branch
      %183 = sbr.rel (0) target = $region21
    $region20: #{net_alpha_forward.1} parent=1 // pred_region
      %185 = dma.done [#allocation3], 128
    $region21: #{net_alpha_forward.1} parent=1 // pred_fallthru
      _
    %186 = vsyncpa [#allocation3], 1

</llo_original>
